<compile_context>
chip_gen: v5e
topology: v5e:2x2
jax: 0.10.0
libtpu: 0.0.40
codegen_flags: <defaults>
</compile_context>

<pallas_src>
import functools

import jax
import jax.numpy as jnp
import numpy as np
from jax.experimental import pallas as pl
from jax.experimental.pallas import tpu as pltpu

_VMEM_LIMIT = 48 * 1024 * 1024  # above default scoped limits, below physical VMEM on all gens


# ----------------------------------------------------------------------------
# Crop-and-resize (TF crop_and_resize semantics, extrapolation_value = 0)
# ----------------------------------------------------------------------------
def _interp_matrix(coords, size):
    # coords: (crop,) sample positions in source-pixel coords -> (crop, size) bilinear
    # weights; rows are all-zero if the point is outside the image.
    idx = jnp.arange(size, dtype=jnp.float32)[None, :]
    floor = jnp.floor(coords)[:, None]
    frac = coords[:, None] - floor
    valid = ((coords >= 0.0) & (coords <= size - 1.0)).astype(jnp.float32)[:, None]
    w = (1.0 - frac) * (idx == floor).astype(jnp.float32) \
        + frac * (idx == floor + 1.0).astype(jnp.float32)
    return (w * valid).astype(jnp.float32)


def _box_weight_mats(boxes, crop_h, crop_w, H, W):
    # boxes: (B, 4) normalized [y1, x1, y2, x2]
    y1, x1, y2, x2 = boxes[:, 0], boxes[:, 1], boxes[:, 2], boxes[:, 3]
    i = jnp.arange(crop_h, dtype=jnp.float32)
    j = jnp.arange(crop_w, dtype=jnp.float32)
    if crop_h > 1:
        ys = y1[:, None] * (H - 1) + i[None, :] * ((y2 - y1)[:, None] * (H - 1) / (crop_h - 1))
    else:
        ys = 0.5 * (y1 + y2)[:, None] * (H - 1) * jnp.ones((1, crop_h), jnp.float32)
    if crop_w > 1:
        xs = x1[:, None] * (W - 1) + j[None, :] * ((x2 - x1)[:, None] * (W - 1) / (crop_w - 1))
    else:
        xs = 0.5 * (x1 + x2)[:, None] * (W - 1) * jnp.ones((1, crop_w), jnp.float32)
    wy = jax.vmap(lambda c: _interp_matrix(c, H))(ys)   # (B, crop_h, H)
    wx = jax.vmap(lambda c: _interp_matrix(c, W))(xs)   # (B, crop_w, W)
    return wy, wx


def _group_weight_mats(boxes_list, crop, H, W):
    # boxes_list: G arrays of (N, 4); returns (N, G*crop*crop, H*W) bf16 Kronecker weights,
    # grouped per image so one grid step handles all G boxes of an image.
    N = boxes_list[0].shape[0]
    G = len(boxes_list)
    all_boxes = jnp.stack(boxes_list, axis=1).reshape(G * N, 4)
    wy, wx = _box_weight_mats(all_boxes, crop, crop, H, W)
    wk = jnp.einsum('bih,bjw->bijhw', wy, wx).reshape(N, G * crop * crop, H * W)
    return wk.astype(jnp.bfloat16)


def _crop3_kernel(wk_ref, fm_ref, ent_ref, rel_ref, *, chcw):
    # wk_ref: (1, 3*chcw, H*W) bf16; fm_ref: (1, H*W, C) bf16
    # ent_ref: (2, 1, chcw, C) bf16 (sbj/obj rows of this image); rel_ref: (1, chcw, C) bf16
    crops = jnp.dot(wk_ref[0], fm_ref[0], preferred_element_type=jnp.float32)  # (3*chcw, C)
    ent_ref[0, 0] = crops[0:chcw].astype(jnp.bfloat16)
    ent_ref[1, 0] = crops[chcw:2 * chcw].astype(jnp.bfloat16)
    rel_ref[0] = crops[2 * chcw:3 * chcw].astype(jnp.bfloat16)


def _crop2_kernel(wk_ref, fm_ref, ent_ref, *, chcw):
    crops = jnp.dot(wk_ref[0], fm_ref[0], preferred_element_type=jnp.float32)
    ent_ref[0, 0] = crops[0:chcw].astype(jnp.bfloat16)
    ent_ref[1, 0] = crops[chcw:2 * chcw].astype(jnp.bfloat16)


def _crop1_kernel(wk_ref, fm_ref, rel_ref):
    rel_ref[0] = jnp.dot(wk_ref[0], fm_ref[0],
                         preferred_element_type=jnp.float32).astype(jnp.bfloat16)


def crop3_per_image(fmap_hwc, sbj_boxes, obj_boxes, rel_boxes, crop, H, W):
    # One grid step per image; one MXU matmul produces all three crops, written directly
    # into the entity (2, N, chcw, C) and relation (N, chcw, C) layouts.
    N, HW, C = fmap_hwc.shape
    chcw = crop * crop
    wk3 = _group_weight_mats([sbj_boxes, obj_boxes, rel_boxes], crop, H, W)
    return pl.pallas_call(
        functools.partial(_crop3_kernel, chcw=chcw),
        out_shape=(jax.ShapeDtypeStruct((2, N, chcw, C), jnp.bfloat16),
                   jax.ShapeDtypeStruct((N, chcw, C), jnp.bfloat16)),
        grid=(N,),
        in_specs=[pl.BlockSpec((1, 3 * chcw, HW), lambda n: (n, 0, 0)),
                  pl.BlockSpec((1, HW, C), lambda n: (n, 0, 0))],
        out_specs=(pl.BlockSpec((2, 1, chcw, C), lambda n: (0, n, 0, 0)),
                   pl.BlockSpec((1, chcw, C), lambda n: (n, 0, 0))),
        compiler_params=pltpu.CompilerParams(dimension_semantics=("parallel",),
                                             vmem_limit_bytes=_VMEM_LIMIT),
    )(wk3, fmap_hwc)


def crop2_per_image(fmap_hwc, sbj_boxes, obj_boxes, crop, H, W):
    N, HW, C = fmap_hwc.shape
    chcw = crop * crop
    wk2 = _group_weight_mats([sbj_boxes, obj_boxes], crop, H, W)
    return pl.pallas_call(
        functools.partial(_crop2_kernel, chcw=chcw),
        out_shape=jax.ShapeDtypeStruct((2, N, chcw, C), jnp.bfloat16),
        grid=(N,),
        in_specs=[pl.BlockSpec((1, 2 * chcw, HW), lambda n: (n, 0, 0)),
                  pl.BlockSpec((1, HW, C), lambda n: (n, 0, 0))],
        out_specs=pl.BlockSpec((2, 1, chcw, C), lambda n: (0, n, 0, 0)),
        compiler_params=pltpu.CompilerParams(dimension_semantics=("parallel",),
                                             vmem_limit_bytes=_VMEM_LIMIT),
    )(wk2, fmap_hwc)


def crop1_per_image(fmap_hwc, boxes, crop, H, W):
    N, HW, C = fmap_hwc.shape
    chcw = crop * crop
    wk1 = _group_weight_mats([boxes], crop, H, W)
    return pl.pallas_call(
        _crop1_kernel,
        out_shape=jax.ShapeDtypeStruct((N, chcw, C), jnp.bfloat16),
        grid=(N,),
        in_specs=[pl.BlockSpec((1, chcw, HW), lambda n: (n, 0, 0)),
                  pl.BlockSpec((1, HW, C), lambda n: (n, 0, 0))],
        out_specs=pl.BlockSpec((1, chcw, C), lambda n: (n, 0, 0)),
        compiler_params=pltpu.CompilerParams(dimension_semantics=("parallel",),
                                             vmem_limit_bytes=_VMEM_LIMIT),
    )(wk1, fmap_hwc)


# ----------------------------------------------------------------------------
# Fused EntityNet (sbj + obj) + RelationNet in ONE pallas_call.
#   EntityNet  : flatten -> Linear -> ReLU (inter) -> Linear (emb)
#   RelationNet: Linear+ReLU on rel crop, then rel = h@w2h + s_emb@w2se + s_int@w2si
#                + o_emb@w2oe + o_int@w2oi + b2 as five accumulating matmuls.
# Grid = (row tiles "parallel", K tiles "arbitrary"); first-layer reductions accumulate
# in f32 VMEM scratch, second layers + outputs run at the last K step.
# ----------------------------------------------------------------------------
def _fused_mlp_kernel(ent_ref, rel_ref, we1_ref, be1_ref, we2_ref, be2_ref,
                      wr1_ref, br1_ref, w2h_ref, w2se_ref, w2si_ref, w2oe_ref,
                      w2oi_ref, br2_ref, ent_emb_ref, rel_emb_ref,
                      hs_acc, ho_acc, hr_acc):
    k = pl.program_id(1)

    @pl.when(k == 0)
    def _():
        hs_acc[...] = jnp.zeros_like(hs_acc)
        ho_acc[...] = jnp.zeros_like(ho_acc)
        hr_acc[...] = jnp.zeros_like(hr_acc)

    we1 = we1_ref[...]
    hs_acc[...] += jnp.dot(ent_ref[0], we1, preferred_element_type=jnp.float32)
    ho_acc[...] += jnp.dot(ent_ref[1], we1, preferred_element_type=jnp.float32)
    hr_acc[...] += jnp.dot(rel_ref[...], wr1_ref[...], preferred_element_type=jnp.float32)

    @pl.when(k == pl.num_programs(1) - 1)
    def _():
        h_s = jnp.maximum(hs_acc[...] + be1_ref[...], 0.0)       # sbj inter  (tn, hid) f32
        h_o = jnp.maximum(ho_acc[...] + be1_ref[...], 0.0)       # obj inter
        h_r = jnp.maximum(hr_acc[...] + br1_ref[...], 0.0)       # rel hidden
        h_s16 = h_s.astype(jnp.bfloat16)
        h_o16 = h_o.astype(jnp.bfloat16)
        h_r16 = h_r.astype(jnp.bfloat16)

        e_s = jnp.dot(h_s16, we2_ref[...], preferred_element_type=jnp.float32) + be2_ref[...]
        e_o = jnp.dot(h_o16, we2_ref[...], preferred_element_type=jnp.float32) + be2_ref[...]
        ent_emb_ref[0] = e_s
        ent_emb_ref[1] = e_o

        rel = jnp.dot(h_r16, w2h_ref[...], preferred_element_type=jnp.float32)
        rel += jnp.dot(e_s.astype(jnp.bfloat16), w2se_ref[...],
                       preferred_element_type=jnp.float32)
        rel += jnp.dot(h_s16, w2si_ref[...], preferred_element_type=jnp.float32)
        rel += jnp.dot(e_o.astype(jnp.bfloat16), w2oe_ref[...],
                       preferred_element_type=jnp.float32)
        rel += jnp.dot(h_o16, w2oi_ref[...], preferred_element_type=jnp.float32)
        rel_emb_ref[...] = rel + br2_ref[...]


def _to_channel_last_rows(w, C, chcw):
    # Rows of w are ordered (c, p) (PyTorch flatten of (C, ch, cw)); the lane-dense crop
    # flattens as (p, c) -> permute rows once host-side (free plumbing).
    return w.reshape(C, chcw, w.shape[1]).transpose(1, 0, 2).reshape(C * chcw, w.shape[1])


def _pick_row_tile(n):
    for t in (128, 64, 32, 16, 8):
        if n % t == 0:
            return t
    return n                      # small n: full-extent block is always legal


def _pick_num_k_tiles(d_ent, d_rel, max_tile=2048):
    nk = 1
    while (max(d_ent, d_rel) // nk > max_tile
           and d_ent % (2 * nk) == 0 and d_rel % (2 * nk) == 0
           and (d_ent // (2 * nk)) % 128 == 0 and (d_rel // (2 * nk)) % 128 == 0):
        nk *= 2
    return nk


def fused_entity_relation(ent_x, rel_x, params, C, ent_crop, rel_crop):
    # ent_x: (2, N, D) bf16 (sbj rows = ent_x[0], obj rows = ent_x[1]); rel_x: (N, Dr) bf16
    _, N, D = ent_x.shape
    Dr = rel_x.shape[1]
    hid = params["ent"]["w1"].shape[1]
    emb = params["ent"]["w2"].shape[1]

    we1 = _to_channel_last_rows(params["ent"]["w1"], C, ent_crop * ent_crop).astype(jnp.bfloat16)
    wr1 = _to_channel_last_rows(params["rel"]["w1"], C, rel_crop * rel_crop).astype(jnp.bfloat16)
    we2 = params["ent"]["w2"].astype(jnp.bfloat16)
    w2h = params["rel"]["w2h"].astype(jnp.bfloat16)
    w2se = params["rel"]["w2se"].astype(jnp.bfloat16)
    w2si = params["rel"]["w2si"].astype(jnp.bfloat16)
    w2oe = params["rel"]["w2oe"].astype(jnp.bfloat16)
    w2oi = params["rel"]["w2oi"].astype(jnp.bfloat16)
    be1, be2 = params["ent"]["b1"], params["ent"]["b2"]
    br1, br2 = params["rel"]["b1"], params["rel"]["b2"]

    tn = _pick_row_tile(N)
    nk = _pick_num_k_tiles(D, Dr)
    tk, tkr = D // nk, Dr // nk
    ni = N // tn

    in_specs = [
        pl.BlockSpec((2, tn, tk), lambda i, k: (0, i, k)),     # ent crops
        pl.BlockSpec((tn, tkr), lambda i, k: (i, k)),          # rel crops
        pl.BlockSpec((tk, hid), lambda i, k: (k, 0)),          # we1 (K-tiled stream)
        pl.BlockSpec((1, hid), lambda i, k: (0, 0)),           # be1
        pl.BlockSpec((hid, emb), lambda i, k: (0, 0)),         # we2
        pl.BlockSpec((1, emb), lambda i, k: (0, 0)),           # be2
        pl.BlockSpec((tkr, hid), lambda i, k: (k, 0)),         # wr1 (K-tiled stream)
        pl.BlockSpec((1, hid), lambda i, k: (0, 0)),           # br1
        pl.BlockSpec((hid, emb), lambda i, k: (0, 0)),         # w2h
        pl.BlockSpec((emb, emb), lambda i, k: (0, 0)),         # w2se
        pl.BlockSpec((hid, emb), lambda i, k: (0, 0)),         # w2si
        pl.BlockSpec((emb, emb), lambda i, k: (0, 0)),         # w2oe
        pl.BlockSpec((hid, emb), lambda i, k: (0, 0)),         # w2oi
        pl.BlockSpec((1, emb), lambda i, k: (0, 0)),           # br2
    ]
    out_specs = (
        pl.BlockSpec((2, tn, emb), lambda i, k: (0, i, 0)),    # ent embeddings (sbj/obj)
        pl.BlockSpec((tn, emb), lambda i, k: (i, 0)),          # rel embeddings
    )
    ent_emb, rel_emb = pl.pallas_call(
        _fused_mlp_kernel,
        out_shape=(jax.ShapeDtypeStruct((2, N, emb), jnp.float32),
                   jax.ShapeDtypeStruct((N, emb), jnp.float32)),
        grid=(ni, nk),
        in_specs=in_specs,
        out_specs=out_specs,
        scratch_shapes=[pltpu.VMEM((tn, hid), jnp.float32)] * 3,
        compiler_params=pltpu.CompilerParams(
            dimension_semantics=("parallel", "arbitrary"),
            vmem_limit_bytes=_VMEM_LIMIT),
    )(ent_x, rel_x, we1, be1, we2, be2, wr1, br1,
      w2h, w2se, w2si, w2oe, w2oi, br2)
    return ent_emb, rel_emb


# ----------------------------------------------------------------------------
# VisionModel forward (backbone = Identity -> stop_gradient)
# ----------------------------------------------------------------------------
def vision_model_forward(params, images, sbj_boxes, obj_boxes, rel_boxes,
                         ent_crop, rel_crop):
    N, C, H, W = images.shape
    feature_maps = jax.lax.stop_gradient(images)        # Identity.forward: x.detach()
    # Lane-dense feature layout: (N, H*W, C) so the crop matmul output has C on the lanes.
    fmap_hwc = jnp.transpose(feature_maps, (0, 2, 3, 1)).reshape(N, H * W, C)
    fmap_hwc = fmap_hwc.astype(jnp.bfloat16)

    if ent_crop == rel_crop:
        ent_crops, rel_crops = crop3_per_image(fmap_hwc, sbj_boxes, obj_boxes, rel_boxes,
                                               ent_crop, H, W)
    else:
        ent_crops = crop2_per_image(fmap_hwc, sbj_boxes, obj_boxes, ent_crop, H, W)
        rel_crops = crop1_per_image(fmap_hwc, rel_boxes, rel_crop, H, W)

    # Contiguous-dim collapses only (bitcast at XLA level, no HBM copy).
    ent_flat = ent_crops.reshape(2, N, ent_crop * ent_crop * C)
    rel_flat = rel_crops.reshape(N, rel_crop * rel_crop * C)

    ent_emb, rel_emb = fused_entity_relation(ent_flat, rel_flat, params, C,
                                             ent_crop, rel_crop)
    return ent_emb[0], ent_emb[1], rel_emb


# ----------------------------------------------------------------------------
# Pure-JAX reference (f32, PyTorch-order flatten) for correctness check
# ----------------------------------------------------------------------------
def _ref_crop(fmaps, boxes, box_ind, ch, cw):
    wy, wx = _box_weight_mats(boxes, ch, cw, fmaps.shape[2], fmaps.shape[3])
    f = fmaps[box_ind]                                   # (B, C, H, W)
    return jnp.einsum('bih,bchw,bjw->bcij', wy, f, wx)


def _ref_entity(x, p):
    h = jnp.maximum(x @ p["w1"] + p["b1"], 0.0)
    return h @ p["w2"] + p["b2"], h


def _ref_relation(relf, semb, sint, oemb, oint, p):
    h = jnp.maximum(relf @ p["w1"] + p["b1"], 0.0)
    return (h @ p["w2h"] + semb @ p["w2se"] + sint @ p["w2si"]
            + oemb @ p["w2oe"] + oint @ p["w2oi"] + p["b2"])


def reference_forward(params, images, sbj_boxes, obj_boxes, rel_boxes, ent_crop, rel_crop):
    N = images.shape[0]
    fm = images
    box_ind = jnp.arange(N, dtype=jnp.int32)
    ent_box_ind = jnp.tile(box_ind, 2)
    ent_boxes = jnp.concatenate([sbj_boxes, obj_boxes], axis=0)
    ent_f = _ref_crop(fm, ent_boxes, ent_box_ind, ent_crop, ent_crop).reshape(2 * N, -1)
    rel_f = _ref_crop(fm, rel_boxes, box_ind, rel_crop, rel_crop).reshape(N, -1)
    s_emb, s_int = _ref_entity(ent_f[:N], params["ent"])
    o_emb, o_int = _ref_entity(ent_f[N:], params["ent"])
    r_emb = _ref_relation(rel_f, s_emb, s_int, o_emb, o_int, params["rel"])
    return s_emb, o_emb, r_emb


# ----------------------------------------------------------------------------
# Deterministic parameter init
# ----------------------------------------------------------------------------
def init_params(key, feature_dim, ent_crop, rel_crop, emb_dim, hid_dim):
    ks = jax.random.split(key, 16)
    ent_in = feature_dim * ent_crop * ent_crop
    rel_in = feature_dim * rel_crop * rel_crop
    s = 0.05
    ent = dict(
        w1=jax.random.normal(ks[0], (ent_in, hid_dim), jnp.float32) * s,
        b1=jax.random.normal(ks[1], (1, hid_dim), jnp.float32) * s,
        w2=jax.random.normal(ks[2], (hid_dim, emb_dim), jnp.float32) * s,
        b2=jax.random.normal(ks[3], (1, emb_dim), jnp.float32) * s,
    )
    rel = dict(
        w1=jax.random.normal(ks[4], (rel_in, hid_dim), jnp.float32) * s,
        b1=jax.random.normal(ks[5], (1, hid_dim), jnp.float32) * s,
        w2h=jax.random.normal(ks[6], (hid_dim, emb_dim), jnp.float32) * s,
        w2se=jax.random.normal(ks[7], (emb_dim, emb_dim), jnp.float32) * s,
        w2si=jax.random.normal(ks[8], (hid_dim, emb_dim), jnp.float32) * s,
        w2oe=jax.random.normal(ks[9], (emb_dim, emb_dim), jnp.float32) * s,
        w2oi=jax.random.normal(ks[10], (hid_dim, emb_dim), jnp.float32) * s,
        b2=jax.random.normal(ks[11], (1, emb_dim), jnp.float32) * s,
    )
    return {"ent": ent, "rel": rel}


def make_boxes(key, n):
    k1, k2 = jax.random.split(key)
    tl = jax.random.uniform(k1, (n, 2), minval=0.0, maxval=0.5)
    sz = jax.random.uniform(k2, (n, 2), minval=0.3, maxval=0.5)
    br = jnp.clip(tl + sz, 0.0, 1.0)
    # [y1, x1, y2, x2] normalized
    return jnp.concatenate([tl[:, :1], tl[:, 1:2], br[:, :1], br[:, 1:2]], axis=1)


if __name__ == "__main__":
    key = jax.random.PRNGKey(0)
    N, C, H, W = 2, 4, 16, 16
    ENT_CROP, REL_CROP, EMB, HID = 4, 4, 8, 32

    k_img, k_sb, k_ob, k_rb, k_par = jax.random.split(key, 5)
    images = jax.random.normal(k_img, (N, C, H, W), jnp.float32)
    sbj_boxes = make_boxes(k_sb, N)
    obj_boxes = make_boxes(k_ob, N)
    rel_boxes = make_boxes(k_rb, N)
    params = init_params(k_par, C, ENT_CROP, REL_CROP, EMB, HID)

    sbj_emb, obj_emb, rel_emb = vision_model_forward(
        params, images, sbj_boxes, obj_boxes, rel_boxes, ENT_CROP, REL_CROP)
    jax.block_until_ready((sbj_emb, obj_emb, rel_emb))

    r_sbj, r_obj, r_rel = reference_forward(
        params, images, sbj_boxes, obj_boxes, rel_boxes, ENT_CROP, REL_CROP)
    # bf16 MXU path vs f32 reference -> loosened tolerance.
    for got, want in ((sbj_emb, r_sbj), (obj_emb, r_obj), (rel_emb, r_rel)):
        np.testing.assert_allclose(np.asarray(got), np.asarray(want), rtol=2e-2, atol=2e-2)

    print("KERNEL_OK")
</pallas_src>

<mosaic_0001>
module attributes {stable_mosaic.version = 11 : i64} {
  func.func @_crop3_kernel(%arg0: i32, %arg1: memref<1x48x256xbf16, #tpu.memory_space<vmem>>, %arg2: memref<1x256x4xbf16, #tpu.memory_space<vmem>>, %arg3: memref<2x1x16x4xbf16, #tpu.memory_space<vmem>>, %arg4: memref<1x16x4xbf16, #tpu.memory_space<vmem>>) attributes {dimension_semantics = [#tpu.dimension_semantics<parallel>], iteration_bounds = array<i64: 2>, scalar_prefetch = 0 : i64, scratch_operands = 0 : i64, tpu.core_type = #tpu.core_type<tc>, window_params = [{transform_indices = @transform_0, window_bounds = array<i64: 1, 48, 256>}, {transform_indices = @transform_1, window_bounds = array<i64: 1, 256, 4>}, {transform_indices = @transform_2, window_bounds = array<i64: 2, 1, 16, 4>}, {transform_indices = @transform_3, window_bounds = array<i64: 1, 16, 4>}]} {
    %c0 = arith.constant 0 : index
    %c0_0 = arith.constant 0 : index
    %c0_1 = arith.constant 0 : index
    %0 = vector.load %arg1[%c0, %c0_0, %c0_1] : memref<1x48x256xbf16, #tpu.memory_space<vmem>>, vector<1x48x256xbf16>
    %1 = vector.shape_cast %0 : vector<1x48x256xbf16> to vector<48x256xbf16>
    %c0_2 = arith.constant 0 : index
    %c0_3 = arith.constant 0 : index
    %c0_4 = arith.constant 0 : index
    %2 = vector.load %arg2[%c0_2, %c0_3, %c0_4] : memref<1x256x4xbf16, #tpu.memory_space<vmem>>, vector<1x256x4xbf16>
    %3 = vector.shape_cast %2 : vector<1x256x4xbf16> to vector<256x4xbf16>
    %cst = arith.constant dense<0.000000e+00> : vector<48x4xf32>
    %4 = tpu.matmul %1, %3, %cst {dimension_numbers = #tpu.dot_dimension_numbers<[1], [0], [0], [1], [0, 0, 1, 1], [], []>} : vector<48x256xbf16>, vector<256x4xbf16>, vector<48x4xf32> -> vector<48x4xf32>
    %5 = vector.extract_strided_slice %4 {offsets = [0, 0], sizes = [16, 4], strides = [1, 1]} : vector<48x4xf32> to vector<16x4xf32>
    %6 = arith.truncf %5 : vector<16x4xf32> to vector<16x4xbf16>
    %c0_5 = arith.constant 0 : index
    %c0_6 = arith.constant 0 : index
    %c0_7 = arith.constant 0 : index
    %c0_8 = arith.constant 0 : index
    %7 = vector.load %arg3[%c0_5, %c0_6, %c0_7, %c0_8] : memref<2x1x16x4xbf16, #tpu.memory_space<vmem>>, vector<1x1x16x4xbf16>
    %8 = vector.shape_cast %7 : vector<1x1x16x4xbf16> to vector<16x4xbf16>
    %9 = vector.shape_cast %6 : vector<16x4xbf16> to vector<1x1x16x4xbf16>
    tpu.vector_store %arg3[%c0_5, %c0_6, %c0_7, %c0_8], %9 {strides = array<i32>} : memref<2x1x16x4xbf16, #tpu.memory_space<vmem>>, vector<1x1x16x4xbf16>,
    %10 = vector.extract_strided_slice %4 {offsets = [16, 0], sizes = [16, 4], strides = [1, 1]} : vector<48x4xf32> to vector<16x4xf32>
    %11 = arith.truncf %10 : vector<16x4xf32> to vector<16x4xbf16>
    %c1 = arith.constant 1 : index
    %c0_9 = arith.constant 0 : index
    %c0_10 = arith.constant 0 : index
    %c0_11 = arith.constant 0 : index
    %12 = vector.load %arg3[%c1, %c0_9, %c0_10, %c0_11] : memref<2x1x16x4xbf16, #tpu.memory_space<vmem>>, vector<1x1x16x4xbf16>
    %13 = vector.shape_cast %12 : vector<1x1x16x4xbf16> to vector<16x4xbf16>
    %14 = vector.shape_cast %11 : vector<16x4xbf16> to vector<1x1x16x4xbf16>
    tpu.vector_store %arg3[%c1, %c0_9, %c0_10, %c0_11], %14 {strides = array<i32>} : memref<2x1x16x4xbf16, #tpu.memory_space<vmem>>, vector<1x1x16x4xbf16>,
    %15 = vector.extract_strided_slice %4 {offsets = [32, 0], sizes = [16, 4], strides = [1, 1]} : vector<48x4xf32> to vector<16x4xf32>
    %16 = arith.truncf %15 : vector<16x4xf32> to vector<16x4xbf16>
    %c0_12 = arith.constant 0 : index
    %c0_13 = arith.constant 0 : index
    %c0_14 = arith.constant 0 : index
    %17 = vector.load %arg4[%c0_12, %c0_13, %c0_14] : memref<1x16x4xbf16, #tpu.memory_space<vmem>>, vector<1x16x4xbf16>
    %18 = vector.shape_cast %17 : vector<1x16x4xbf16> to vector<16x4xbf16>
    %19 = vector.shape_cast %16 : vector<16x4xbf16> to vector<1x16x4xbf16>
    tpu.vector_store %arg4[%c0_12, %c0_13, %c0_14], %19 {strides = array<i32>} : memref<1x16x4xbf16, #tpu.memory_space<vmem>>, vector<1x16x4xbf16>,
    return
  }
  func.func @transform_0(%arg0: i32) -> (i32, i32, i32) {
    %c0_i32 = arith.constant 0 : i32
    %c0_i32_0 = arith.constant 0 : i32
    %c0_i32_1 = arith.constant 0 : i32
    return %arg0, %c0_i32, %c0_i32_0 : i32, i32, i32
  }
  func.func @transform_1(%arg0: i32) -> (i32, i32, i32) {
    %c0_i32 = arith.constant 0 : i32
    %c0_i32_0 = arith.constant 0 : i32
    %c0_i32_1 = arith.constant 0 : i32
    return %arg0, %c0_i32, %c0_i32_0 : i32, i32, i32
  }
  func.func @transform_2(%arg0: i32) -> (i32, i32, i32, i32) {
    %c0_i32 = arith.constant 0 : i32
    %c0_i32_0 = arith.constant 0 : i32
    %c0_i32_1 = arith.constant 0 : i32
    %c0_i32_2 = arith.constant 0 : i32
    return %c0_i32, %arg0, %c0_i32_0, %c0_i32_1 : i32, i32, i32, i32
  }
  func.func @transform_3(%arg0: i32) -> (i32, i32, i32) {
    %c0_i32 = arith.constant 0 : i32
    %c0_i32_0 = arith.constant 0 : i32
    %c0_i32_1 = arith.constant 0 : i32
    return %arg0, %c0_i32, %c0_i32_0 : i32, i32, i32
  }
}

</mosaic_0001>

<llo_original>
// kernel: tpu_custom_call.1
$region0: #{tpu_custom_call.1}
  #allocation0 [shape = 'u32[]', space=smem, size = 0x4, offset = 0x4, fixed_abs, tag = 'smem constant byte address 0x4 - core index']
  #allocation1 [shape = 'u32[72,128]{1,0:T(1,128)}', space=vmem, size = 0x9000, scoped, tag = 'internal scratch']
  %s0 = inlined_call_operand.vmem [shape: bf16[2,48,256], index: 0, kind: input, shape index: {}]
  %s1 = inlined_call_operand.vmem [shape: bf16[2,256,4], index: 1, kind: input, shape index: {}]
  %s2 = inlined_call_operand.vmem [shape: bf16[2,2,16,4], index: 2, kind: output, shape index: {0}]
  %s3 = inlined_call_operand.vmem [shape: bf16[2,16,4], index: 3, kind: output, shape index: {1}]
  %4 = xla_tuple %s2, %s3
  %s5 = sld [smem:[#allocation0]]
  $region86: #{tpu_custom_call.1} parent=0
    _
  %s7 = ssub.s32 1, %s5
  %s8 = scalar_select 0, %s7, %s5
  $region1: #{tpu_custom_call.1} parent=0
    #allocation2 [shape = 'u8[16384]{0}', space=vmem, size = 0x4000, scoped, tag = 'output window, operand 0']
    loop: start=0, step=1, limit=4
    $region2: #{tpu_custom_call.1} parent=1 // loop_pre_header
      _
    $region3: #{tpu_custom_call.1} parent=1 // loop_header
      %s10 = sphi 0, %s14
      %p11 = scmp.ge.s32.totalorder %s10, 4
      %s20 = sphi 0, %s22
      %s23 = sphi 0, %s20
      %s24 = sphi 0, %s23
      %s40 = sphi 0, %s24
      %s46 = sphi 0, %s48
      %s49 = sphi 0, %s46
      %s50 = sphi 0, %s49
      %s66 = sphi 0, %s50
      %s72 = sphi 0, %s74
      %s75 = sphi 0, %s72
      %s76 = sphi 0, %s75
      %s92 = sphi 0, %s76
      %s98 = sphi 0, %s100
      %s101 = sphi 0, %s98
      %s102 = sphi 0, %s101
      %s118 = sphi 0, %s102
    $region4: #{tpu_custom_call.1} parent=1 // loop_header_branch
      %13 = sbr.rel (%p11) target = $region8
    $region5: #{tpu_custom_call.1} parent=1 // loop_body
      %s15 = ssub.s32 %s10, 1
      %s16 = ssub.s32 %s10, 2
      %s17 = sadd.s32 %s10, 1
      %s18 = ssub.s32 %s10, %s17
      %p19 = scmp.eq.s32.totalorder %s18, 0
      %s21 = sadd.s32 %s20, 1
      %s22 = scalar_select %p19, %s20, %s21
      %p25 = pneg %p19
      %p26 = scmp.eq.s32.totalorder %s10, 1
      %p27 = por %p25, %p26
      %p28 = scmp.ne.s32.totalorder %s20, %s23
      %p29 = scmp.eq.s32.totalorder %s10, 0
      %p30 = por %p28, %p29
      %p31 = scmp.ne.s32.totalorder %s20, %s23
      %p32 = scmp.eq.s32.totalorder %s15, 1
      %p33 = por %p31, %p32
      %p34 = scmp.ne.s32.totalorder %s23, %s24
      %p35 = scmp.eq.s32.totalorder %s15, 0
      %p36 = por %p34, %p35
      %p37 = scmp.ne.s32.totalorder %s23, %s24
      %p38 = scmp.eq.s32.totalorder %s16, 1
      %p39 = por %p37, %p38
      %p41 = scmp.ne.s32.totalorder %s24, %s40
      %p42 = scmp.eq.s32.totalorder %s16, 0
      %p43 = por %p41, %p42
      %s44 = ssub.s32 %s10, %s17
      %p45 = scmp.eq.s32.totalorder %s44, 0
      %s47 = sadd.s32 %s46, 1
      %s48 = scalar_select %p45, %s46, %s47
      %p51 = pneg %p45
      %p52 = scmp.eq.s32.totalorder %s10, 1
      %p53 = por %p51, %p52
      %p54 = scmp.ne.s32.totalorder %s46, %s49
      %p55 = scmp.eq.s32.totalorder %s10, 0
      %p56 = por %p54, %p55
      %p57 = scmp.ne.s32.totalorder %s46, %s49
      %p58 = scmp.eq.s32.totalorder %s15, 1
      %p59 = por %p57, %p58
      %p60 = scmp.ne.s32.totalorder %s49, %s50
      %p61 = scmp.eq.s32.totalorder %s15, 0
      %p62 = por %p60, %p61
      %p63 = scmp.ne.s32.totalorder %s49, %s50
      %p64 = scmp.eq.s32.totalorder %s16, 1
      %p65 = por %p63, %p64
      %p67 = scmp.ne.s32.totalorder %s50, %s66
      %p68 = scmp.eq.s32.totalorder %s16, 0
      %p69 = por %p67, %p68
      %s70 = ssub.s32 %s10, %s17
      %p71 = scmp.eq.s32.totalorder %s70, 0
      %s73 = sadd.s32 %s72, 1
      %s74 = scalar_select %p71, %s72, %s73
      %p77 = pneg %p71
      %p78 = scmp.eq.s32.totalorder %s10, 1
      %p79 = por %p77, %p78
      %p80 = scmp.ne.s32.totalorder %s72, %s75
      %p81 = scmp.eq.s32.totalorder %s10, 0
      %p82 = por %p80, %p81
      %p83 = scmp.ne.s32.totalorder %s72, %s75
      %p84 = scmp.eq.s32.totalorder %s15, 1
      %p85 = por %p83, %p84
      %p86 = scmp.ne.s32.totalorder %s75, %s76
      %p87 = scmp.eq.s32.totalorder %s15, 0
      %p88 = por %p86, %p87
      %p89 = scmp.ne.s32.totalorder %s75, %s76
      %p90 = scmp.eq.s32.totalorder %s16, 1
      %p91 = por %p89, %p90
      %p93 = scmp.ne.s32.totalorder %s76, %s92
      %p94 = scmp.eq.s32.totalorder %s16, 0
      %p95 = por %p93, %p94
      %s96 = ssub.s32 %s10, %s17
      %p97 = scmp.eq.s32.totalorder %s96, 0
      %s99 = sadd.s32 %s98, 1
      %s100 = scalar_select %p97, %s98, %s99
      %p103 = pneg %p97
      %p104 = scmp.eq.s32.totalorder %s10, 1
      %p105 = por %p103, %p104
      %p106 = scmp.ne.s32.totalorder %s98, %s101
      %p107 = scmp.eq.s32.totalorder %s10, 0
      %p108 = por %p106, %p107
      %p109 = scmp.ne.s32.totalorder %s98, %s101
      %p110 = scmp.eq.s32.totalorder %s15, 1
      %p111 = por %p109, %p110
      %p112 = scmp.ne.s32.totalorder %s101, %s102
      %p113 = scmp.eq.s32.totalorder %s15, 0
      %p114 = por %p112, %p113
      %p115 = scmp.ne.s32.totalorder %s101, %s102
      %p116 = scmp.eq.s32.totalorder %s16, 1
      %p117 = por %p115, %p116
      %p119 = scmp.ne.s32.totalorder %s102, %s118
      %p120 = scmp.eq.s32.totalorder %s16, 0
      %p121 = por %p119, %p120
      %p122 = scmp.le.s32.totalorder 1, %s10
      %p123 = scmp.lt.s32.totalorder %s10, 3
      %p124 = pnand %p122, %p123
      %p125 = pneg %p124
      // Predicated region
      $region9: #{tpu_custom_call.1} parent=5 // pred_check
        _
      $region10: #{tpu_custom_call.1} parent=5 // pred_check_branch
        %127 = sbr.rel (%p124) target = $region12
      $region11: #{tpu_custom_call.1} parent=5 // pred_region
        %s128 = ssub.s32 %s10, 1
      $region12: #{tpu_custom_call.1} parent=5 // pred_fallthru
        _
      %p129 = scmp.lt.s32.totalorder %s10, 2
      // Predicated region
      $region13: #{tpu_custom_call.1} parent=5 // pred_check
        %p130 = pneg %p129
      $region14: #{tpu_custom_call.1} parent=5 // pred_check_branch
        %132 = sbr.rel (%p130) target = $region16
      $region15: #{tpu_custom_call.1} parent=5 // pred_region
        // Predicated region
        $region17: #{tpu_custom_call.1} parent=15 // pred_check
          %p133 = pneg %p30
        $region18: #{tpu_custom_call.1} parent=15 // pred_check_branch
          %135 = sbr.rel (%p133) target = $region20
        $region19: #{tpu_custom_call.1} parent=15 // pred_region
          %p136 = scmp.lt.s32.totalorder %s10, 1
          %s137 = scalar_select %p136, %s10, 1
          %s138 = smul.addr %s137, 12
          %s139 = smul.addr %s138, 4
          %s140 = scalar_lea.vmem %s0, %s139
        $region20: #{tpu_custom_call.1} parent=15 // pred_fallthru
          _
        // Predicated region
        $region21: #{tpu_custom_call.1} parent=15 // pred_check
          %p141 = pneg %p56
        $region22: #{tpu_custom_call.1} parent=15 // pred_check_branch
          %143 = sbr.rel (%p141) target = $region24
        $region23: #{tpu_custom_call.1} parent=15 // pred_region
          %p144 = scmp.lt.s32.totalorder %s10, 1
          %s145 = scalar_select %p144, %s10, 1
          %s146 = smul.addr %s145, 32
          %s147 = smul.addr %s146, 4
          %s148 = scalar_lea.vmem %s1, %s147
        $region24: #{tpu_custom_call.1} parent=15 // pred_fallthru
          _
      $region16: #{tpu_custom_call.1} parent=5 // pred_fallthru
        _
      %p149 = scmp.le.s32.totalorder 1, %s10
      %p150 = scmp.lt.s32.totalorder %s10, 3
      %p151 = pnand %p149, %p150
      %p152 = pneg %p151
      // Predicated region
      $region25: #{tpu_custom_call.1} parent=5 // pred_check
        _
      $region26: #{tpu_custom_call.1} parent=5 // pred_check_branch
        %154 = sbr.rel (%p151) target = $region28
      $region27: #{tpu_custom_call.1} parent=5 // pred_region
        %s155 = ssub.s32 %s10, 1
        %p156 = scmp.lt.s32.totalorder %s15, 1
        %s157 = scalar_select %p156, %s15, 1
        %s158 = smul.addr %s157, 12
        %s159 = smul.addr %s158, 4
        %s160 = scalar_lea.vmem %s0, %s159
        %p161 = pneg %p36
        %p162 = pneg %p33
        %p163 = scmp.lt.s32.totalorder %s15, 1
        %s164 = scalar_select %p163, %s15, 1
        %s165 = smul.addr %s164, 32
        %s166 = smul.addr %s165, 4
        %s167 = scalar_lea.vmem %s1, %s166
        %p168 = pneg %p62
        %p169 = pneg %p59
        %p170 = pneg %p88
        %p171 = pneg %p85
        %s172 = sand.u32 %s75, 1
        %s173 = sand.u32 %s75, 1
        %s174 = smul.addr %s173, 16
        %s175 = scalar_lea.vmem [#allocation2], %s174
        %p176 = pneg %p114
        %p177 = pneg %p111
        %p178 = scmp.lt.s32.totalorder %s15, 1
        %s179 = scalar_select %p178, %s15, 1
        %s180 = smul.addr %s179, 2
        %s181 = smul.addr %s180, 4
        %s182 = scalar_lea.vmem %s3, %s181
        %p183 = scmp.lt.s32.totalorder %s15, 1
        %s184 = scalar_select %p183, %s15, 1
        %s185 = smul.addr %s184, 12
        %s186 = smul.addr %s185, 4
        %s187 = scalar_lea.vmem %s0, %s186
        %p188 = scmp.lt.s32.totalorder %s15, 1
        %s189 = scalar_select %p188, %s15, 1
        %s190 = smul.addr %s189, 32
        %s191 = smul.addr %s190, 4
        %s192 = scalar_lea.vmem %s1, %s191
        %p193 = scmp.lt.s32.totalorder %s15, 1
        %s194 = scalar_select %p193, %s15, 1
        %s195 = smul.addr %s194, 2
        %s196 = smul.addr %s195, 4
        %s197 = scalar_lea.vmem %s3, %s196
        %v198 = vld [vmem:[%s187] sm:$0xff]
        %v199 = vld [vmem:[%s187 + $0x8] sm:$0xff]
        %v200 = vld [vmem:[%s187 + $0x10] sm:$0xff]
        %v201 = vld [vmem:[%s187 + $0x18] sm:$0xff]
        %v202 = vld [vmem:[%s187 + $0x20] sm:$0xff]
        %v203 = vld [vmem:[%s187 + $0x28] sm:$0xff]
        %v204 = vld [vmem:[%s192] sm:$0xf]
        %v205 = vld [vmem:[%s192 + $0x4] sm:$0xf]
        %v206 = vld [vmem:[%s192 + $0x8] sm:$0xf]
        %v207 = vld [vmem:[%s192 + $0xc] sm:$0xf]
        %v208 = vld [vmem:[%s192 + $0x10] sm:$0xf]
        %v209 = vld [vmem:[%s192 + $0x14] sm:$0xf]
        %v210 = vld [vmem:[%s192 + $0x18] sm:$0xf]
        %v211 = vld [vmem:[%s192 + $0x1c] sm:$0xf]
        %v212 = vld [vmem:[%s192 + $0x20] sm:$0xf]
        %v213 = vld [vmem:[%s192 + $0x24] sm:$0xf]
        %v214 = vld [vmem:[%s192 + $0x28] sm:$0xf]
        %v215 = vld [vmem:[%s192 + $0x2c] sm:$0xf]
        %v216 = vld [vmem:[%s192 + $0x30] sm:$0xf]
        %v217 = vld [vmem:[%s192 + $0x34] sm:$0xf]
        %v218 = vld [vmem:[%s192 + $0x38] sm:$0xf]
        %v219 = vld [vmem:[%s192 + $0x3c] sm:$0xf]
        %v220 = vld [vmem:[%s192 + $0x40] sm:$0xf]
        %v221 = vld [vmem:[%s192 + $0x44] sm:$0xf]
        %v222 = vld [vmem:[%s192 + $0x48] sm:$0xf]
        %v223 = vld [vmem:[%s192 + $0x4c] sm:$0xf]
        %v224 = vld [vmem:[%s192 + $0x50] sm:$0xf]
        %v225 = vld [vmem:[%s192 + $0x54] sm:$0xf]
        %v226 = vld [vmem:[%s192 + $0x58] sm:$0xf]
        %v227 = vld [vmem:[%s192 + $0x5c] sm:$0xf]
        %v228 = vld [vmem:[%s192 + $0x60] sm:$0xf]
        %v229 = vld [vmem:[%s192 + $0x64] sm:$0xf]
        %v230 = vld [vmem:[%s192 + $0x68] sm:$0xf]
        %v231 = vld [vmem:[%s192 + $0x6c] sm:$0xf]
        %v232 = vld [vmem:[%s192 + $0x70] sm:$0xf]
        %v233 = vld [vmem:[%s192 + $0x74] sm:$0xf]
        %v234 = vld [vmem:[%s192 + $0x78] sm:$0xf]
        %v235 = vld [vmem:[%s192 + $0x7c] sm:$0xf]
        %v242 = vunpack.c.l.b16 %v198
        %v243 = vunpack.c.h.b16 %v198
        %v244 = vunpack.c.l.b16 %v199
        %v245 = vunpack.c.h.b16 %v199
        %v246 = vunpack.c.l.b16 %v200
        %v247 = vunpack.c.h.b16 %v200
        %v248 = vunpack.c.l.b16 %v201
        %v249 = vunpack.c.h.b16 %v201
        %v250 = vunpack.c.l.b16 %v202
        %v251 = vunpack.c.h.b16 %v202
        %v252 = vunpack.c.l.b16 %v203
        %v253 = vunpack.c.h.b16 %v203
        %v254 = vpack.c.b16 %v244, %v242
        %v255 = vpack.c.b16 %v245, %v243
        %v256 = vpack.c.b16 %v248, %v246
        %v257 = vpack.c.b16 %v249, %v247
        %v258 = vpack.c.b16 %v252, %v250
        %v259 = vpack.c.b16 %v253, %v251
        %v298 = vunpack.c.l.b16 %v204
        %v299 = vunpack.c.l.b16 %v205
        %v300 = vunpack.c.l.b16 %v206
        %v301 = vunpack.c.l.b16 %v207
        %v302 = vunpack.c.l.b16 %v208
        %v303 = vunpack.c.l.b16 %v209
        %v304 = vunpack.c.l.b16 %v210
        %v305 = vunpack.c.l.b16 %v211
        %v306 = vunpack.c.l.b16 %v212
        %v307 = vunpack.c.l.b16 %v213
        %v308 = vunpack.c.l.b16 %v214
        %v309 = vunpack.c.l.b16 %v215
        %v310 = vunpack.c.l.b16 %v216
        %v311 = vunpack.c.l.b16 %v217
        %v312 = vunpack.c.l.b16 %v218
        %v313 = vunpack.c.l.b16 %v219
        %v314 = vunpack.c.l.b16 %v220
        %v315 = vunpack.c.l.b16 %v221
        %v316 = vunpack.c.l.b16 %v222
        %v317 = vunpack.c.l.b16 %v223
        %v318 = vunpack.c.l.b16 %v224
        %v319 = vunpack.c.l.b16 %v225
        %v320 = vunpack.c.l.b16 %v226
        %v321 = vunpack.c.l.b16 %v227
        %v322 = vunpack.c.l.b16 %v228
        %v323 = vunpack.c.l.b16 %v229
        %v324 = vunpack.c.l.b16 %v230
        %v325 = vunpack.c.l.b16 %v231
        %v326 = vunpack.c.l.b16 %v232
        %v327 = vunpack.c.l.b16 %v233
        %v328 = vunpack.c.l.b16 %v234
        %v329 = vunpack.c.l.b16 %v235
        %v330 = vpack.c.b16 %v299, %v298
        %v331 = vpack.c.b16 %v301, %v300
        %v332 = vpack.c.b16 %v303, %v302
        %v333 = vpack.c.b16 %v305, %v304
        %v334 = vpack.c.b16 %v307, %v306
        %v335 = vpack.c.b16 %v309, %v308
        %v336 = vpack.c.b16 %v311, %v310
        %v337 = vpack.c.b16 %v313, %v312
        %v338 = vpack.c.b16 %v315, %v314
        %v339 = vpack.c.b16 %v317, %v316
        %v340 = vpack.c.b16 %v319, %v318
        %v341 = vpack.c.b16 %v321, %v320
        %v342 = vpack.c.b16 %v323, %v322
        %v343 = vpack.c.b16 %v325, %v324
        %v344 = vpack.c.b16 %v327, %v326
        %v345 = vpack.c.b16 %v329, %v328
        %362 = vmatpush.bf16.msra.mxu0 %v337
        %363 = vmatpush.bf16.msra.mxu0 %v336
        %364 = vmatpush.bf16.msra.mxu0 %v335
        %365 = vmatpush.bf16.msra.mxu0 %v334
        %366 = vmatpush.bf16.msra.mxu0 %v333
        %367 = vmatpush.bf16.msra.mxu0 %v332
        %368 = vmatpush.bf16.msra.mxu0 %v331
        %369 = vmatpush.bf16.msra.mxu0 %v330
        %370 = vmatmul.bf16.gmra.mxu0 %v254
        %v371 = vpop.f32.mrf.mxu0
        %v372 = vadd.f32 0.0, %v371
        %v373 = vpop.f32.mrf.mxu0
        %v374 = vadd.f32 0.0, %v373
        %375 = vmatmul.bf16.gmra.mxu0 %v256
        %v376 = vpop.f32.mrf.mxu0
        %v377 = vadd.f32 0.0, %v376
        %v378 = vpop.f32.mrf.mxu0
        %v379 = vadd.f32 0.0, %v378
        %380 = vmatmul.bf16.gmra.mxu0 %v258
        %v381 = vpop.f32.mrf.mxu0
        %v382 = vadd.f32 0.0, %v381
        %v383 = vpop.f32.mrf.mxu0
        %v384 = vadd.f32 0.0, %v383
        %385 = vdwg.mxu0
        %386 = vmatpush.bf16.msra.mxu0 %v345
        %387 = vmatpush.bf16.msra.mxu0 %v344
        %388 = vmatpush.bf16.msra.mxu0 %v343
        %389 = vmatpush.bf16.msra.mxu0 %v342
        %390 = vmatpush.bf16.msra.mxu0 %v341
        %391 = vmatpush.bf16.msra.mxu0 %v340
        %392 = vmatpush.bf16.msra.mxu0 %v339
        %393 = vmatpush.bf16.msra.mxu0 %v338
        %394 = vmatmul.bf16.gmra.mxu0 %v255
        %v395 = vpop.f32.mrf.mxu0
        %v396 = vadd.f32 %v372, %v395
        %v397 = vpop.f32.mrf.mxu0
        %v398 = vadd.f32 %v374, %v397
        %399 = vmatmul.bf16.gmra.mxu0 %v257
        %v400 = vpop.f32.mrf.mxu0
        %v401 = vadd.f32 %v377, %v400
        %v402 = vpop.f32.mrf.mxu0
        %v403 = vadd.f32 %v379, %v402
        %404 = vmatmul.bf16.gmra.mxu0 %v259
        %v405 = vpop.f32.mrf.mxu0
        %v406 = vadd.f32 %v382, %v405
        %v407 = vpop.f32.mrf.mxu0
        %v408 = vadd.f32 %v384, %v407
        %409 = vdwg.mxu0
        %v410 = vpack.c.bf16 %v396, %v396
        %v411 = vpack.c.bf16 %v398, %v398
        %vm412 = vcmask 27648
        %413 = vst.msk [vmem:[%s175] sm:$0xf] %vm412, %v410
        %414 = vst.msk [vmem:[%s175 + $0x4] sm:$0xf] %vm412, %v411
        %v415 = vpack.c.bf16 %v401, %v401
        %v416 = vpack.c.bf16 %v403, %v403
        %s417 = scalar_lea.vmem %s175, 8 [#allocation2]
        %418 = vst.msk [vmem:[%s417] sm:$0xf] %vm412, %v415
        %419 = vst.msk [vmem:[%s417 + $0x4] sm:$0xf] %vm412, %v416
        %v420 = vpack.c.bf16 %v406, %v406
        %v421 = vpack.c.bf16 %v408, %v408
        %422 = vst.msk [vmem:[%s197] sm:$0xf] %vm412, %v420
        %423 = vst.msk [vmem:[%s197 + $0x4] sm:$0xf] %vm412, %v421
        %s424 = sand.u32 %s75, 1
        %s425 = sand.u32 %s75, 1
        %s426 = smul.addr %s425, 16
        %s427 = scalar_lea.vmem [#allocation2], %s426
        %p428 = scmp.lt.s32.totalorder %s15, 1
        %s429 = scalar_select %p428, %s15, 1
        %s430 = smul.addr %s429, 2
        %s431 = smul.addr %s430, 4
        %s432 = scalar_lea.vmem %s3, %s431
        // Predicated region
        $region29: #{tpu_custom_call.1} parent=27 // pred_check
          %p433 = pneg %p85
        $region30: #{tpu_custom_call.1} parent=27 // pred_check_branch
          %435 = sbr.rel (%p433) target = $region32
        $region31: #{tpu_custom_call.1} parent=27 // pred_region
          %s436 = smul.addr %s15, 2
          %s437 = smul.addr %s436, 4
          %s438 = scalar_lea.vmem %s2, %s437
          // Predicated region
          $region33: #{tpu_custom_call.1} parent=31 // pred_check
            _
          $region34: #{tpu_custom_call.1} parent=31 // pred_check_branch
            %440 = sbr.rel (0) target = $region36
          $region35: #{tpu_custom_call.1} parent=31 // pred_region
            // Predicated region
            $region37: #{tpu_custom_call.1} parent=35 // pred_check
              _
            $region38: #{tpu_custom_call.1} parent=35 // pred_check_branch
              %442 = sbr.rel target = $region40
            $region39: #{tpu_custom_call.1} parent=35 // pred_region
              // Predicated region
              $region52: #{tpu_custom_call.1} parent=39 // pred_check
                _
              $region53: #{tpu_custom_call.1} parent=39 // pred_check_branch
                %464 = sbr.rel (0) target = $region55
              $region54: #{tpu_custom_call.1} parent=39 // pred_region
                loop: start=0, step=1, limit=1
                $region56: #{tpu_custom_call.1} parent=54 // loop_pre_header
                  _
                $region57: #{tpu_custom_call.1} parent=54 // loop_header
                  %s466 = sphi 0, %s470
                  %p467 = scmp.ge.s32.totalorder %s466, 1
                  %s471 = sphi %s427, %s427
                  %s472 = sphi %s438, %s438
                $region58: #{tpu_custom_call.1} parent=54 // loop_header_branch
                  %469 = sbr.rel (%p467) target = $region62
                $region59: #{tpu_custom_call.1} parent=54 // loop_body
                  _
                $region60: #{tpu_custom_call.1} parent=54 // loop_footer
                  %s470 = sadd.s32 1, %s466
                $region61: #{tpu_custom_call.1} parent=54 // loop_footer_branch
                  %465 = sbr.rel target = $region57
                $region62: #{tpu_custom_call.1} parent=54 // loop_exit
                  _
                %s474 = ssub.s32 16, 1
                loop: start=0, step=1, limit=1
                $region63: #{tpu_custom_call.1} parent=54 // loop_pre_header
                  _
                $region64: #{tpu_custom_call.1} parent=54 // loop_header
                  %s476 = sphi 0, %s480
                  %p477 = scmp.ge.s32.totalorder %s476, 1
                  %s481 = sphi %s427, %s427
                  %s482 = sphi %s438, %s438
                $region65: #{tpu_custom_call.1} parent=54 // loop_header_branch
                  %479 = sbr.rel (%p477) target = $region69
                $region66: #{tpu_custom_call.1} parent=54 // loop_body
                  %v483 = vld [vmem:[%s481] sm:%s474]
                  %484 = vst [vmem:[%s482] sm:%s474] %v483
                  %v485 = vld [vmem:[%s481 + $0x4] sm:%s474]
                  %486 = vst [vmem:[%s482 + $0x4] sm:%s474] %v485
                  %v487 = vld [vmem:[%s481 + $0x8] sm:%s474]
                  %488 = vst [vmem:[%s482 + $0x10] sm:%s474] %v487
                  %v489 = vld [vmem:[%s481 + $0xc] sm:%s474]
                  %490 = vst [vmem:[%s482 + $0x14] sm:%s474] %v489
                $region67: #{tpu_custom_call.1} parent=54 // loop_footer
                  %s480 = sadd.s32 1, %s476
                $region68: #{tpu_custom_call.1} parent=54 // loop_footer_branch
                  %475 = sbr.rel target = $region64
                $region69: #{tpu_custom_call.1} parent=54 // loop_exit
                  _
              $region55: #{tpu_custom_call.1} parent=39 // pred_fallthru
                _
            $region40: #{tpu_custom_call.1} parent=35 // pred_fallthru
              _
            // Predicated region
            $region41: #{tpu_custom_call.1} parent=35 // pred_check
              _
            $region42: #{tpu_custom_call.1} parent=35 // pred_check_branch
              %444 = sbr.rel (0) target = $region44
            $region43: #{tpu_custom_call.1} parent=35 // pred_region
              %s446 = ssub.s32 16, 1
              loop: start=0, step=1, limit=1
              $region45: #{tpu_custom_call.1} parent=43 // loop_pre_header
                _
              $region46: #{tpu_custom_call.1} parent=43 // loop_header
                %s448 = sphi 0, %s452
                %p449 = scmp.ge.s32.totalorder %s448, 1
                %s453 = sphi %s427, %s427
                %s454 = sphi %s438, %s438
              $region47: #{tpu_custom_call.1} parent=43 // loop_header_branch
                %451 = sbr.rel (%p449) target = $region51
              $region48: #{tpu_custom_call.1} parent=43 // loop_body
                %v455 = vld [vmem:[%s453] sm:%s446]
                %456 = vst [vmem:[%s454] sm:%s446] %v455
                %v457 = vld [vmem:[%s453 + $0x4] sm:%s446]
                %458 = vst [vmem:[%s454 + $0x4] sm:%s446] %v457
                %v459 = vld [vmem:[%s453 + $0x8] sm:%s446]
                %460 = vst [vmem:[%s454 + $0x10] sm:%s446] %v459
                %v461 = vld [vmem:[%s453 + $0xc] sm:%s446]
                %462 = vst [vmem:[%s454 + $0x14] sm:%s446] %v461
              $region49: #{tpu_custom_call.1} parent=43 // loop_footer
                %s452 = sadd.s32 1, %s448
              $region50: #{tpu_custom_call.1} parent=43 // loop_footer_branch
                %447 = sbr.rel target = $region46
              $region51: #{tpu_custom_call.1} parent=43 // loop_exit
                _
            $region44: #{tpu_custom_call.1} parent=35 // pred_fallthru
              _
          $region36: #{tpu_custom_call.1} parent=31 // pred_fallthru
            _
          %491 = vnop
        $region32: #{tpu_custom_call.1} parent=27 // pred_fallthru
          _
        // Predicated region
        $region70: #{tpu_custom_call.1} parent=27 // pred_check
          %p492 = pneg %p111
        $region71: #{tpu_custom_call.1} parent=27 // pred_check_branch
          %494 = sbr.rel (%p492) target = $region73
        $region72: #{tpu_custom_call.1} parent=27 // pred_region
          _
        $region73: #{tpu_custom_call.1} parent=27 // pred_fallthru
          _
      $region28: #{tpu_custom_call.1} parent=5 // pred_fallthru
        _
      %p495 = scmp.le.s32.totalorder 2, %s10
      // Predicated region
      $region74: #{tpu_custom_call.1} parent=5 // pred_check
        %p496 = pneg %p495
      $region75: #{tpu_custom_call.1} parent=5 // pred_check_branch
        %498 = sbr.rel (%p496) target = $region77
      $region76: #{tpu_custom_call.1} parent=5 // pred_region
        %s499 = ssub.s32 %s10, 2
        // Predicated region
        $region78: #{tpu_custom_call.1} parent=76 // pred_check
          %p500 = pneg %p91
        $region79: #{tpu_custom_call.1} parent=76 // pred_check_branch
          %502 = sbr.rel (%p500) target = $region81
        $region80: #{tpu_custom_call.1} parent=76 // pred_region
          %s503 = sand.u32 %s76, 1
          %s504 = sand.u32 %s76, 1
          %s505 = smul.addr %s504, 16
          %s506 = scalar_lea.vmem [#allocation2], %s505
        $region81: #{tpu_custom_call.1} parent=76 // pred_fallthru
          _
        // Predicated region
        $region82: #{tpu_custom_call.1} parent=76 // pred_check
          %p507 = pneg %p117
        $region83: #{tpu_custom_call.1} parent=76 // pred_check_branch
          %509 = sbr.rel (%p507) target = $region85
        $region84: #{tpu_custom_call.1} parent=76 // pred_region
          %p510 = scmp.lt.s32.totalorder %s16, 1
          %s511 = scalar_select %p510, %s16, 1
          %s512 = smul.addr %s511, 2
          %s513 = smul.addr %s512, 4
          %s514 = scalar_lea.vmem %s3, %s513
        $region85: #{tpu_custom_call.1} parent=76 // pred_fallthru
          _
      $region77: #{tpu_custom_call.1} parent=5 // pred_fallthru
        _
    $region6: #{tpu_custom_call.1} parent=1 // loop_footer
      %s14 = sadd.s32 1, %s10
    $region7: #{tpu_custom_call.1} parent=1 // loop_footer_branch
      %9 = sbr.rel target = $region3
    $region8: #{tpu_custom_call.1} parent=1 // loop_exit
      _

</llo_original>
